<compile_context>
chip_gen: v6e
topology: v6e:2x2x1
jax: 0.10.0
libtpu: 0.0.40
codegen_flags: <defaults>
</compile_context>

<pallas_src>
from functools import partial

import jax
import jax.numpy as jnp
from jax.experimental import pallas as pl
from jax.experimental.pallas import tpu as pltpu


def _sv_kernel(cum_ref, factor_ref, eps_ref, z_ref, chi2nu_ref, out_ref):
    """One batch block of the stochastic-volatility simulator.

    cum_ref    : VMEM f32[npad, npad]  upper-triangular U, U[j,t] = (j <= t)  (resident)
    factor_ref : VMEM f32[1, npad]     1 + mask*5*sigma                       (resident)
    eps_ref    : VMEM f32[rows, npad]  N(0,1)/tau, zero on padded lanes
    z_ref      : VMEM f32[rows, npad]  N(0,1), zero on padded lanes
    chi2nu_ref : VMEM f32[rows, npad]  Chi2(nu)/nu, 1 on padded lanes
    out_ref    : VMEM f32[rows, npad]  simulated x_t
    """
    # s_t = sum_{j<=t} eps_j on the MXU: s = eps @ U.
    s = jnp.dot(eps_ref[...], cum_ref[...], preferred_element_type=jnp.float32)
    # StudentT(df=nu, loc=0, scale=exp(s)).rsample() = exp(s) * Z * rsqrt(Chi2(nu)/nu)
    t_std = z_ref[...] * jax.lax.rsqrt(jnp.maximum(chi2nu_ref[...], 1e-30))
    out_ref[...] = jnp.exp(s) * t_std * factor_ref[...]


def _block_layout(batch):
    """Pick (rows_per_block, nblocks): big sublane blocks, >=2 parallel blocks for v7x."""
    nblocks = 2 if (batch >= 16 and batch % 16 == 0) else 1
    rows = batch // nblocks
    while rows > 256 and rows % 2 == 0:   # cap block height; stay well under VMEM limits
        nblocks *= 2
        rows //= 2
    assert batch % nblocks == 0 and rows % 8 == 0, "batch must be a multiple of 8 (16 if >=16)"
    return rows, nblocks


@partial(jax.jit, static_argnames=("T", "sigma", "batch"))
def _stoch_vol_padded(log_theta, key, T=100, sigma=0.0, batch=8):
    """Run `batch` independent simulations; returns lane-padded (batch, npad) float32."""
    N = T + 1
    npad = ((N + 127) // 128) * 128
    rows, nblocks = _block_layout(batch)

    log_theta = jnp.asarray(log_theta, jnp.float32)
    theta = jnp.exp(log_theta)
    nu = theta[0] + 1.0
    tau = theta[1] + 1.0

    k_eps, k_z, k_chi = jax.random.split(key, 3)
    pad = ((0, 0), (0, npad - N))

    # epsilons = N(0,1)/tau; padded lanes are zero so cumsum / exp stay finite.
    eps = jax.random.normal(k_eps, (batch, N), jnp.float32) / tau
    eps = jnp.pad(eps, pad)
    # StudentT numerator normals; zero on padding -> padded outputs are exactly 0.
    z = jax.random.normal(k_z, (batch, N), jnp.float32)
    z = jnp.pad(z, pad)
    # Chi2(nu)/nu = 2*Gamma(nu/2)/nu, sampled only for real lanes; 1 on padding.
    # TODO(synk): gamma rejection sampling has no clean in-kernel Pallas equivalent;
    # it runs as device-side XLA fused into this jit.
    chi2nu = 2.0 * jax.random.gamma(k_chi, nu / 2.0, (batch, N), jnp.float32) / nu
    chi2nu = jnp.pad(chi2nu, pad, constant_values=1.0)

    # Loop-invariant operands (resident across grid steps via index_map -> (0, 0)).
    idx = jnp.arange(npad)
    cum = (idx[:, None] <= idx[None, :]).astype(jnp.float32)          # (npad, npad)
    mask = ((idx >= 50) & (idx < 65) & (idx < N)).astype(jnp.float32)  # torch: mask[50:65]=1
    factor = (1.0 + mask * jnp.float32(5.0 * sigma)).reshape(1, npad)

    cost = pl.CostEstimate(
        flops=2 * batch * npad * npad,
        transcendentals=2 * batch * npad,
        bytes_accessed=4 * (4 * batch * npad + npad * npad + npad),
    )

    out = pl.pallas_call(
        _sv_kernel,
        out_shape=jax.ShapeDtypeStruct((batch, npad), jnp.float32),
        grid=(nblocks,),
        in_specs=[
            pl.BlockSpec((npad, npad), lambda b: (0, 0)),   # cum: resident
            pl.BlockSpec((1, npad), lambda b: (0, 0)),      # factor: resident
            pl.BlockSpec((rows, npad), lambda b: (b, 0)),   # eps
            pl.BlockSpec((rows, npad), lambda b: (b, 0)),   # z
            pl.BlockSpec((rows, npad), lambda b: (b, 0)),   # chi2/nu
        ],
        out_specs=pl.BlockSpec((rows, npad), lambda b: (b, 0)),
        compiler_params=pltpu.CompilerParams(
            dimension_semantics=("parallel",)),             # batch blocks -> both TCs on v7x
        cost_estimate=cost,
    )(cum, factor, eps, z, chi2nu)

    return out  # (batch, npad); consumers slice lanes [:N] when they need the exact shape


def stoch_vol_simulate(log_theta, key, T=100, sigma=0.0, batch=8):
    """Run `batch` independent StochVolSimulator(T, sigma) simulations -> (batch, T+1)."""
    return _stoch_vol_padded(log_theta, key, T=T, sigma=sigma, batch=batch)[:, : T + 1]


def stoch_vol_forward(log_theta, key, T=100, sigma=0.0):
    """Module-equivalent forward: returns [x] with x of shape (T+1,)."""
    xs = stoch_vol_simulate(log_theta, key, T=T, sigma=sigma, batch=8)
    return [xs[0]]


if __name__ == "__main__":
    key = jax.random.PRNGKey(0)
    k_theta, k_sim = jax.random.split(key)

    # log_theta has shape (2,): [log(nu-1-ish), log(tau-1-ish)]
    log_theta = 0.1 * jax.random.normal(k_theta, (2,), jnp.float32)

    T = 100        # module default; mask region 50:65 is exercised
    sigma = 0.5    # nonzero so the mask factor is visible

    # Batched path: 16 independent simulations -> 2 parallel blocks of 8 rows.
    xs = stoch_vol_simulate(log_theta, k_sim, T=T, sigma=sigma, batch=16)
    xs = jax.block_until_ready(xs)
    assert xs.shape == (16, T + 1)
    assert xs.dtype == jnp.float32
    assert bool(jnp.all(jnp.isfinite(xs)))

    # Module-equivalent single forward.
    (x,) = stoch_vol_forward(log_theta, k_sim, T=T, sigma=sigma)
    x = jax.block_until_ready(x)
    assert x.shape == (T + 1,)
    assert x.dtype == jnp.float32
    assert bool(jnp.all(jnp.isfinite(x)))

    print("KERNEL_OK")
</pallas_src>

<mosaic_0001>
module attributes {stable_mosaic.version = 11 : i64} {
  func.func @_sv_kernel(%arg0: i32, %arg1: memref<128x128xf32, #tpu.memory_space<vmem>>, %arg2: memref<1x128xf32, #tpu.memory_space<vmem>>, %arg3: memref<8x128xf32, #tpu.memory_space<vmem>>, %arg4: memref<8x128xf32, #tpu.memory_space<vmem>>, %arg5: memref<8x128xf32, #tpu.memory_space<vmem>>, %arg6: memref<8x128xf32, #tpu.memory_space<vmem>>) attributes {dimension_semantics = [#tpu.dimension_semantics<parallel>], iteration_bounds = array<i64: 2>, scalar_prefetch = 0 : i64, scratch_operands = 0 : i64, tpu.core_type = #tpu.core_type<tc>, window_params = [{pipeline_mode = #tpu.pipeline_mode<synchronous>, transform_indices = @transform_0, window_bounds = array<i64: 128, 128>}, {pipeline_mode = #tpu.pipeline_mode<synchronous>, transform_indices = @transform_1, window_bounds = array<i64: 1, 128>}, {transform_indices = @transform_2, window_bounds = array<i64: 8, 128>}, {transform_indices = @transform_3, window_bounds = array<i64: 8, 128>}, {transform_indices = @transform_4, window_bounds = array<i64: 8, 128>}, {transform_indices = @transform_5, window_bounds = array<i64: 8, 128>}]} {
    %c0 = arith.constant 0 : index
    %c0_0 = arith.constant 0 : index
    %0 = vector.load %arg3[%c0, %c0_0] : memref<8x128xf32, #tpu.memory_space<vmem>>, vector<8x128xf32>
    %c0_1 = arith.constant 0 : index
    %c0_2 = arith.constant 0 : index
    %1 = vector.load %arg1[%c0_1, %c0_2] : memref<128x128xf32, #tpu.memory_space<vmem>>, vector<128x128xf32>
    %cst = arith.constant dense<0.000000e+00> : vector<8x128xf32>
    %2 = tpu.matmul %0, %1, %cst {dimension_numbers = #tpu.dot_dimension_numbers<[1], [0], [0], [1], [0, 0, 1, 1], [], []>} : vector<8x128xf32>, vector<128x128xf32>, vector<8x128xf32> -> vector<8x128xf32>
    %c0_3 = arith.constant 0 : index
    %c0_4 = arith.constant 0 : index
    %3 = vector.load %arg4[%c0_3, %c0_4] : memref<8x128xf32, #tpu.memory_space<vmem>>, vector<8x128xf32>
    %c0_5 = arith.constant 0 : index
    %c0_6 = arith.constant 0 : index
    %4 = vector.load %arg5[%c0_5, %c0_6] : memref<8x128xf32, #tpu.memory_space<vmem>>, vector<8x128xf32>
    %cst_7 = arith.constant 1.000000e-30 : f32
    %5 = vector.broadcast %cst_7 : f32 to vector<8x128xf32>
    %6 = arith.maximumf %4, %5 : vector<8x128xf32>
    %7 = math.rsqrt %6 : vector<8x128xf32>
    %8 = arith.mulf %3, %7 : vector<8x128xf32>
    %9 = math.exp %2 : vector<8x128xf32>
    %10 = arith.mulf %9, %8 : vector<8x128xf32>
    %c0_8 = arith.constant 0 : index
    %c0_9 = arith.constant 0 : index
    %11 = vector.load %arg2[%c0_8, %c0_9] : memref<1x128xf32, #tpu.memory_space<vmem>>, vector<1x128xf32>
    %12 = vector.broadcast %11 : vector<1x128xf32> to vector<8x128xf32>
    %13 = arith.mulf %10, %12 : vector<8x128xf32>
    %c0_10 = arith.constant 0 : index
    %c0_11 = arith.constant 0 : index
    %14 = vector.load %arg6[%c0_10, %c0_11] : memref<8x128xf32, #tpu.memory_space<vmem>>, vector<8x128xf32>
    tpu.vector_store %arg6[%c0_10, %c0_11], %13 {strides = array<i32>} : memref<8x128xf32, #tpu.memory_space<vmem>>, vector<8x128xf32>,
    return
  }
  func.func @transform_0(%arg0: i32) -> (i32, i32) {
    %c0_i32 = arith.constant 0 : i32
    %c0_i32_0 = arith.constant 0 : i32
    %c0_i32_1 = arith.constant 0 : i32
    return %c0_i32, %c0_i32_0 : i32, i32
  }
  func.func @transform_1(%arg0: i32) -> (i32, i32) {
    %c0_i32 = arith.constant 0 : i32
    %c0_i32_0 = arith.constant 0 : i32
    %c0_i32_1 = arith.constant 0 : i32
    return %c0_i32, %c0_i32_0 : i32, i32
  }
  func.func @transform_2(%arg0: i32) -> (i32, i32) {
    %c0_i32 = arith.constant 0 : i32
    %c0_i32_0 = arith.constant 0 : i32
    return %arg0, %c0_i32 : i32, i32
  }
  func.func @transform_3(%arg0: i32) -> (i32, i32) {
    %c0_i32 = arith.constant 0 : i32
    %c0_i32_0 = arith.constant 0 : i32
    return %arg0, %c0_i32 : i32, i32
  }
  func.func @transform_4(%arg0: i32) -> (i32, i32) {
    %c0_i32 = arith.constant 0 : i32
    %c0_i32_0 = arith.constant 0 : i32
    return %arg0, %c0_i32 : i32, i32
  }
  func.func @transform_5(%arg0: i32) -> (i32, i32) {
    %c0_i32 = arith.constant 0 : i32
    %c0_i32_0 = arith.constant 0 : i32
    return %arg0, %c0_i32 : i32, i32
  }
}

</mosaic_0001>

<llo_original>
// kernel: _stoch_vol_padded.5
$region0: #{_stoch_vol_padded.5}
  #allocation0 [shape = 'u32[]', space=smem, size = 0x4, offset = 0x4, fixed_abs, tag = 'smem constant byte address 0x4 - core index']
  #allocation1 [shape = 'u32[144,128]{1,0:T(1,128)}', space=vmem, size = 0x12000, scoped, tag = 'internal scratch']
  %s0 = inlined_call_operand.vmem [shape: f32[128,128], index: 0, kind: input, shape index: {}]
  %s1 = inlined_call_operand.vmem [shape: f32[1,128], index: 1, kind: input, shape index: {}]
  %s2 = inlined_call_operand.vmem [shape: f32[16,128], index: 2, kind: input, shape index: {}]
  %s3 = inlined_call_operand.vmem [shape: f32[16,128], index: 3, kind: input, shape index: {}]
  %s4 = inlined_call_operand.vmem [shape: f32[16,128], index: 4, kind: input, shape index: {}]
  %s5 = inlined_call_operand.hbm [shape: f32[16,128], index: 5, kind: output, shape index: {}]
  %s6 = sld [smem:[#allocation0]]
  $region53: #{_stoch_vol_padded.5} parent=0
    _
  %s8 = ssub.s32 1, %s6
  %s9 = scalar_select 0, %s8, %s6
  $region1: #{_stoch_vol_padded.5} parent=0
    #allocation2 [shape = 'u8[8192]{0}', space=vmem, size = 0x2000, scoped, tag = 'output window, operand 0']
    #allocation3 [shape = 's32[2]{0}', space=sflag, size = 0x8, scoped, tag = 'scoped memory for _stoch_vol_padded.5']
    %10 = vsyncpa [#allocation3], 0
    %s11 = scalar_lea.sflag [#allocation3], 1
    %12 = vsyncpa %s11, 0
    loop: start=0, step=1, limit=4
    $region2: #{_stoch_vol_padded.5} parent=1 // loop_pre_header
      _
    $region3: #{_stoch_vol_padded.5} parent=1 // loop_header
      %s14 = sphi 0, %s18
      %p15 = scmp.ge.s32.totalorder %s14, 4
      %s22 = sphi 0, %s22
      %s24 = sphi 0, %s22
      %s25 = sphi 0, %s24
      %s39 = sphi 0, %s25
      %s43 = sphi 0, %s43
      %s45 = sphi 0, %s43
      %s46 = sphi 0, %s45
      %s60 = sphi 0, %s46
      %s66 = sphi 0, %s68
      %s69 = sphi 0, %s66
      %s70 = sphi 0, %s69
      %s86 = sphi 0, %s70
      %s92 = sphi 0, %s94
      %s95 = sphi 0, %s92
      %s96 = sphi 0, %s95
      %s112 = sphi 0, %s96
      %s118 = sphi 0, %s120
      %s121 = sphi 0, %s118
      %s122 = sphi 0, %s121
      %s138 = sphi 0, %s122
      %s144 = sphi 0, %s146
      %s147 = sphi 0, %s144
      %s148 = sphi 0, %s147
      %s164 = sphi 0, %s148
    $region4: #{_stoch_vol_padded.5} parent=1 // loop_header_branch
      %17 = sbr.rel (%p15) target = $region8
    $region5: #{_stoch_vol_padded.5} parent=1 // loop_body
      %s19 = ssub.s32 %s14, 1
      %s20 = ssub.s32 %s14, 2
      %s21 = sadd.s32 %s14, 1
      %s23 = sadd.s32 %s22, 1
      %p26 = scmp.eq.s32.totalorder %s14, 1
      %p27 = scmp.ne.s32.totalorder %s22, %s24
      %p28 = scmp.eq.s32.totalorder %s14, 0
      %p29 = por %p27, %p28
      %p30 = scmp.ne.s32.totalorder %s22, %s24
      %p31 = scmp.eq.s32.totalorder %s19, 1
      %p32 = por %p30, %p31
      %p33 = scmp.ne.s32.totalorder %s24, %s25
      %p34 = scmp.eq.s32.totalorder %s19, 0
      %p35 = por %p33, %p34
      %p36 = scmp.ne.s32.totalorder %s24, %s25
      %p37 = scmp.eq.s32.totalorder %s20, 1
      %p38 = por %p36, %p37
      %p40 = scmp.ne.s32.totalorder %s25, %s39
      %p41 = scmp.eq.s32.totalorder %s20, 0
      %p42 = por %p40, %p41
      %s44 = sadd.s32 %s43, 1
      %p47 = scmp.eq.s32.totalorder %s14, 1
      %p48 = scmp.ne.s32.totalorder %s43, %s45
      %p49 = scmp.eq.s32.totalorder %s14, 0
      %p50 = por %p48, %p49
      %p51 = scmp.ne.s32.totalorder %s43, %s45
      %p52 = scmp.eq.s32.totalorder %s19, 1
      %p53 = por %p51, %p52
      %p54 = scmp.ne.s32.totalorder %s45, %s46
      %p55 = scmp.eq.s32.totalorder %s19, 0
      %p56 = por %p54, %p55
      %p57 = scmp.ne.s32.totalorder %s45, %s46
      %p58 = scmp.eq.s32.totalorder %s20, 1
      %p59 = por %p57, %p58
      %p61 = scmp.ne.s32.totalorder %s46, %s60
      %p62 = scmp.eq.s32.totalorder %s20, 0
      %p63 = por %p61, %p62
      %s64 = ssub.s32 %s14, %s21
      %p65 = scmp.eq.s32.totalorder %s64, 0
      %s67 = sadd.s32 %s66, 1
      %s68 = scalar_select %p65, %s66, %s67
      %p71 = pneg %p65
      %p72 = scmp.eq.s32.totalorder %s14, 1
      %p73 = por %p71, %p72
      %p74 = scmp.ne.s32.totalorder %s66, %s69
      %p75 = scmp.eq.s32.totalorder %s14, 0
      %p76 = por %p74, %p75
      %p77 = scmp.ne.s32.totalorder %s66, %s69
      %p78 = scmp.eq.s32.totalorder %s19, 1
      %p79 = por %p77, %p78
      %p80 = scmp.ne.s32.totalorder %s69, %s70
      %p81 = scmp.eq.s32.totalorder %s19, 0
      %p82 = por %p80, %p81
      %p83 = scmp.ne.s32.totalorder %s69, %s70
      %p84 = scmp.eq.s32.totalorder %s20, 1
      %p85 = por %p83, %p84
      %p87 = scmp.ne.s32.totalorder %s70, %s86
      %p88 = scmp.eq.s32.totalorder %s20, 0
      %p89 = por %p87, %p88
      %s90 = ssub.s32 %s14, %s21
      %p91 = scmp.eq.s32.totalorder %s90, 0
      %s93 = sadd.s32 %s92, 1
      %s94 = scalar_select %p91, %s92, %s93
      %p97 = pneg %p91
      %p98 = scmp.eq.s32.totalorder %s14, 1
      %p99 = por %p97, %p98
      %p100 = scmp.ne.s32.totalorder %s92, %s95
      %p101 = scmp.eq.s32.totalorder %s14, 0
      %p102 = por %p100, %p101
      %p103 = scmp.ne.s32.totalorder %s92, %s95
      %p104 = scmp.eq.s32.totalorder %s19, 1
      %p105 = por %p103, %p104
      %p106 = scmp.ne.s32.totalorder %s95, %s96
      %p107 = scmp.eq.s32.totalorder %s19, 0
      %p108 = por %p106, %p107
      %p109 = scmp.ne.s32.totalorder %s95, %s96
      %p110 = scmp.eq.s32.totalorder %s20, 1
      %p111 = por %p109, %p110
      %p113 = scmp.ne.s32.totalorder %s96, %s112
      %p114 = scmp.eq.s32.totalorder %s20, 0
      %p115 = por %p113, %p114
      %s116 = ssub.s32 %s14, %s21
      %p117 = scmp.eq.s32.totalorder %s116, 0
      %s119 = sadd.s32 %s118, 1
      %s120 = scalar_select %p117, %s118, %s119
      %p123 = pneg %p117
      %p124 = scmp.eq.s32.totalorder %s14, 1
      %p125 = por %p123, %p124
      %p126 = scmp.ne.s32.totalorder %s118, %s121
      %p127 = scmp.eq.s32.totalorder %s14, 0
      %p128 = por %p126, %p127
      %p129 = scmp.ne.s32.totalorder %s118, %s121
      %p130 = scmp.eq.s32.totalorder %s19, 1
      %p131 = por %p129, %p130
      %p132 = scmp.ne.s32.totalorder %s121, %s122
      %p133 = scmp.eq.s32.totalorder %s19, 0
      %p134 = por %p132, %p133
      %p135 = scmp.ne.s32.totalorder %s121, %s122
      %p136 = scmp.eq.s32.totalorder %s20, 1
      %p137 = por %p135, %p136
      %p139 = scmp.ne.s32.totalorder %s122, %s138
      %p140 = scmp.eq.s32.totalorder %s20, 0
      %p141 = por %p139, %p140
      %s142 = ssub.s32 %s14, %s21
      %p143 = scmp.eq.s32.totalorder %s142, 0
      %s145 = sadd.s32 %s144, 1
      %s146 = scalar_select %p143, %s144, %s145
      %p149 = pneg %p143
      %p150 = scmp.eq.s32.totalorder %s14, 1
      %p151 = por %p149, %p150
      %p152 = scmp.ne.s32.totalorder %s144, %s147
      %p153 = scmp.eq.s32.totalorder %s14, 0
      %p154 = por %p152, %p153
      %p155 = scmp.ne.s32.totalorder %s144, %s147
      %p156 = scmp.eq.s32.totalorder %s19, 1
      %p157 = por %p155, %p156
      %p158 = scmp.ne.s32.totalorder %s147, %s148
      %p159 = scmp.eq.s32.totalorder %s19, 0
      %p160 = por %p158, %p159
      %p161 = scmp.ne.s32.totalorder %s147, %s148
      %p162 = scmp.eq.s32.totalorder %s20, 1
      %p163 = por %p161, %p162
      %p165 = scmp.ne.s32.totalorder %s148, %s164
      %p166 = scmp.eq.s32.totalorder %s20, 0
      %p167 = por %p165, %p166
      %p168 = scmp.le.s32.totalorder 1, %s14
      %p169 = scmp.lt.s32.totalorder %s14, 3
      %p170 = pnand %p168, %p169
      %p171 = pneg %p170
      // Predicated region
      $region9: #{_stoch_vol_padded.5} parent=5 // pred_check
        _
      $region10: #{_stoch_vol_padded.5} parent=5 // pred_check_branch
        %173 = sbr.rel (%p170) target = $region12
      $region11: #{_stoch_vol_padded.5} parent=5 // pred_region
        %s174 = ssub.s32 %s14, 1
        // Predicated region
        $region13: #{_stoch_vol_padded.5} parent=11 // pred_check
          %p175 = pneg %p35
        $region14: #{_stoch_vol_padded.5} parent=11 // pred_check_branch
          %177 = sbr.rel (%p175) target = $region16
        $region15: #{_stoch_vol_padded.5} parent=11 // pred_region
          _
        $region16: #{_stoch_vol_padded.5} parent=11 // pred_fallthru
          _
        // Predicated region
        $region17: #{_stoch_vol_padded.5} parent=11 // pred_check
          %p178 = pneg %p56
        $region18: #{_stoch_vol_padded.5} parent=11 // pred_check_branch
          %180 = sbr.rel (%p178) target = $region20
        $region19: #{_stoch_vol_padded.5} parent=11 // pred_region
          _
        $region20: #{_stoch_vol_padded.5} parent=11 // pred_fallthru
          _
      $region12: #{_stoch_vol_padded.5} parent=5 // pred_fallthru
        _
      %p181 = scmp.lt.s32.totalorder %s14, 2
      // Predicated region
      $region21: #{_stoch_vol_padded.5} parent=5 // pred_check
        %p182 = pneg %p181
      $region22: #{_stoch_vol_padded.5} parent=5 // pred_check_branch
        %184 = sbr.rel (%p182) target = $region24
      $region23: #{_stoch_vol_padded.5} parent=5 // pred_region
        // Predicated region
        $region25: #{_stoch_vol_padded.5} parent=23 // pred_check
          %p185 = pneg %p76
        $region26: #{_stoch_vol_padded.5} parent=23 // pred_check_branch
          %187 = sbr.rel (%p185) target = $region28
        $region27: #{_stoch_vol_padded.5} parent=23 // pred_region
          %p188 = scmp.lt.s32.totalorder %s14, 1
          %s189 = scalar_select %p188, %s14, 1
          %s190 = smul.addr %s189, 8
          %s191 = scalar_lea.vmem %s2, %s190
        $region28: #{_stoch_vol_padded.5} parent=23 // pred_fallthru
          _
        // Predicated region
        $region29: #{_stoch_vol_padded.5} parent=23 // pred_check
          %p192 = pneg %p102
        $region30: #{_stoch_vol_padded.5} parent=23 // pred_check_branch
          %194 = sbr.rel (%p192) target = $region32
        $region31: #{_stoch_vol_padded.5} parent=23 // pred_region
          %p195 = scmp.lt.s32.totalorder %s14, 1
          %s196 = scalar_select %p195, %s14, 1
          %s197 = smul.addr %s196, 8
          %s198 = scalar_lea.vmem %s3, %s197
        $region32: #{_stoch_vol_padded.5} parent=23 // pred_fallthru
          _
        // Predicated region
        $region33: #{_stoch_vol_padded.5} parent=23 // pred_check
          %p199 = pneg %p128
        $region34: #{_stoch_vol_padded.5} parent=23 // pred_check_branch
          %201 = sbr.rel (%p199) target = $region36
        $region35: #{_stoch_vol_padded.5} parent=23 // pred_region
          %p202 = scmp.lt.s32.totalorder %s14, 1
          %s203 = scalar_select %p202, %s14, 1
          %s204 = smul.addr %s203, 8
          %s205 = scalar_lea.vmem %s4, %s204
        $region36: #{_stoch_vol_padded.5} parent=23 // pred_fallthru
          _
      $region24: #{_stoch_vol_padded.5} parent=5 // pred_fallthru
        _
      %p206 = scmp.le.s32.totalorder 1, %s14
      %p207 = scmp.lt.s32.totalorder %s14, 3
      %p208 = pnand %p206, %p207
      %p209 = pneg %p208
      // Predicated region
      $region37: #{_stoch_vol_padded.5} parent=5 // pred_check
        _
      $region38: #{_stoch_vol_padded.5} parent=5 // pred_check_branch
        %211 = sbr.rel (%p208) target = $region40
      $region39: #{_stoch_vol_padded.5} parent=5 // pred_region
        %s212 = ssub.s32 %s14, 1
        %p213 = pneg %p35
        %p214 = pneg %p32
        %p215 = pneg %p56
        %p216 = pneg %p53
        %p217 = scmp.lt.s32.totalorder %s19, 1
        %s218 = scalar_select %p217, %s19, 1
        %s219 = smul.addr %s218, 8
        %s220 = scalar_lea.vmem %s2, %s219
        %p221 = pneg %p82
        %p222 = pneg %p79
        %p223 = scmp.lt.s32.totalorder %s19, 1
        %s224 = scalar_select %p223, %s19, 1
        %s225 = smul.addr %s224, 8
        %s226 = scalar_lea.vmem %s3, %s225
        %p227 = pneg %p108
        %p228 = pneg %p105
        %p229 = scmp.lt.s32.totalorder %s19, 1
        %s230 = scalar_select %p229, %s19, 1
        %s231 = smul.addr %s230, 8
        %s232 = scalar_lea.vmem %s4, %s231
        %p233 = pneg %p134
        %p234 = pneg %p131
        %p235 = pneg %p160
        %p236 = pneg %p157
        %s237 = sand.u32 %s147, 1
        %s238 = scalar_lea.sflag [#allocation3], %s237
        %s239 = sand.u32 %s147, 1
        %s240 = smul.addr %s239, 8
        %s241 = scalar_lea.vmem [#allocation2], %s240
        %p242 = scmp.lt.s32.totalorder %s19, 1
        %s243 = scalar_select %p242, %s19, 1
        %s244 = smul.addr %s243, 8
        %s245 = scalar_lea.vmem %s2, %s244
        %p246 = scmp.lt.s32.totalorder %s19, 1
        %s247 = scalar_select %p246, %s19, 1
        %s248 = smul.addr %s247, 8
        %s249 = scalar_lea.vmem %s3, %s248
        %p250 = scmp.lt.s32.totalorder %s19, 1
        %s251 = scalar_select %p250, %s19, 1
        %s252 = smul.addr %s251, 8
        %s253 = scalar_lea.vmem %s4, %s252
        %v254 = vld [vmem:[%s245] sm:$0xff]
        %v255 = vld [vmem:[%s0] sm:$0xff]
        %v256 = vld [vmem:[%s0 + $0x8] sm:$0xff]
        %v257 = vld [vmem:[%s0 + $0x10] sm:$0xff]
        %v258 = vld [vmem:[%s0 + $0x18] sm:$0xff]
        %v259 = vld [vmem:[%s0 + $0x20] sm:$0xff]
        %v260 = vld [vmem:[%s0 + $0x28] sm:$0xff]
        %v261 = vld [vmem:[%s0 + $0x30] sm:$0xff]
        %v262 = vld [vmem:[%s0 + $0x38] sm:$0xff]
        %v263 = vld [vmem:[%s0 + $0x40] sm:$0xff]
        %v264 = vld [vmem:[%s0 + $0x48] sm:$0xff]
        %v265 = vld [vmem:[%s0 + $0x50] sm:$0xff]
        %v266 = vld [vmem:[%s0 + $0x58] sm:$0xff]
        %v267 = vld [vmem:[%s0 + $0x60] sm:$0xff]
        %v268 = vld [vmem:[%s0 + $0x68] sm:$0xff]
        %v269 = vld [vmem:[%s0 + $0x70] sm:$0xff]
        %v270 = vld [vmem:[%s0 + $0x78] sm:$0xff]
        %271 = vmatprep.subr.mxu0 0.0
        %272 = vmatpush1.msra.mxu0 %v270
        %273 = vmatprep.subr.mxu0 0.0
        %274 = vmatpush1.msra.mxu0 %v269
        %275 = vmatprep.subr.mxu0 0.0
        %276 = vmatpush1.msra.mxu0 %v268
        %277 = vmatprep.subr.mxu0 0.0
        %278 = vmatpush1.msra.mxu0 %v267
        %279 = vmatprep.subr.mxu0 0.0
        %280 = vmatpush1.msra.mxu0 %v266
        %281 = vmatprep.subr.mxu0 0.0
        %282 = vmatpush1.msra.mxu0 %v265
        %283 = vmatprep.subr.mxu0 0.0
        %284 = vmatpush1.msra.mxu0 %v264
        %285 = vmatprep.subr.mxu0 0.0
        %286 = vmatpush1.msra.mxu0 %v263
        %287 = vmatprep.subr.mxu0 0.0
        %288 = vmatpush1.msra.mxu0 %v262
        %289 = vmatprep.subr.mxu0 0.0
        %290 = vmatpush1.msra.mxu0 %v261
        %291 = vmatprep.subr.mxu0 0.0
        %292 = vmatpush1.msra.mxu0 %v260
        %293 = vmatprep.subr.mxu0 0.0
        %294 = vmatpush1.msra.mxu0 %v259
        %295 = vmatprep.subr.mxu0 0.0
        %296 = vmatpush1.msra.mxu0 %v258
        %297 = vmatprep.subr.mxu0 0.0
        %298 = vmatpush1.msra.mxu0 %v257
        %299 = vmatprep.subr.mxu0 0.0
        %300 = vmatpush1.msra.mxu0 %v256
        %301 = vmatprep.subr.mxu0 0.0
        %302 = vmatpush1.msra.mxu0 %v255
        %303 = vmatprep.subr.mxu0 0.0
        %304 = vmatpush2.msra.mxu0 0.0
        %305 = vmatprep.subr.mxu0 0.0
        %306 = vmatpush2.msra.mxu0 0.0
        %307 = vmatprep.subr.mxu0 0.0
        %308 = vmatpush2.msra.mxu0 0.0
        %309 = vmatprep.subr.mxu0 0.0
        %310 = vmatpush2.msra.mxu0 0.0
        %311 = vmatprep.subr.mxu0 0.0
        %312 = vmatpush2.msra.mxu0 0.0
        %313 = vmatprep.subr.mxu0 0.0
        %314 = vmatpush2.msra.mxu0 0.0
        %315 = vmatprep.subr.mxu0 0.0
        %316 = vmatpush2.msra.mxu0 0.0
        %317 = vmatprep.subr.mxu0 0.0
        %318 = vmatpush2.msra.mxu0 0.0
        %319 = vmatprep.subr.mxu0 0.0
        %320 = vmatpush2.msra.mxu0 0.0
        %321 = vmatprep.subr.mxu0 0.0
        %322 = vmatpush2.msra.mxu0 0.0
        %323 = vmatprep.subr.mxu0 0.0
        %324 = vmatpush2.msra.mxu0 0.0
        %325 = vmatprep.subr.mxu0 0.0
        %326 = vmatpush2.msra.mxu0 0.0
        %327 = vmatprep.subr.mxu0 0.0
        %328 = vmatpush2.msra.mxu0 0.0
        %329 = vmatprep.subr.mxu0 0.0
        %330 = vmatpush2.msra.mxu0 0.0
        %331 = vmatprep.subr.mxu0 0.0
        %332 = vmatpush2.msra.mxu0 0.0
        %333 = vmatprep.subr.mxu0 0.0
        %334 = vmatpush2.msra.mxu0 0.0
        %335 = vmatprep.mubr.f32.mxu0 0.0
        %336 = vmatmul.mubr.f32.gmra.mxu0 %v254
        %v337 = vpop.f32.mrf.mxu0
        %v338 = vadd.f32 0.0, %v337
        %v339 = vpop.f32.mrf.mxu0
        %340 = vdwg.mxu0
        %v341 = vld [vmem:[%s249] sm:$0xff]
        %v342 = vld [vmem:[%s253] sm:$0xff]
        %v343 = vmax.f32 %v342, 1e-30
        %v344 = vrsqrt.pop %v343
        %v345 = vmul.f32 %v341, %v344
        %v346 = vmul.f32 %v338, 1.442695
        %v347 = vpow.pop %v346
        %v348 = vmul.f32 %v347, %v345
        %v349 = vld [vmem:[%s1] sm:$0x1]
        %v351 = vlaneseq
        %v352 = vshrl.u32 %v351, 7
        %v353 = vsub.s32 0, %v352
        %v354 = vrot.slane %v349, %v353
        %v356 = vmul.f32 %v348, %v354
        %357 = vst [vmem:[%s241] sm:$0xff] %v356
        %s358 = sand.u32 %s147, 1
        %s359 = scalar_lea.sflag [#allocation3], %s358
        %s360 = sand.u32 %s147, 1
        %s361 = smul.addr %s360, 8
        %s362 = scalar_lea.vmem [#allocation2], %s361
        // Predicated region
        $region41: #{_stoch_vol_padded.5} parent=39 // pred_check
          %p363 = pneg %p157
        $region42: #{_stoch_vol_padded.5} parent=39 // pred_check_branch
          %365 = sbr.rel (%p363) target = $region44
        $region43: #{_stoch_vol_padded.5} parent=39 // pred_region
          %s367 = ssub.s32 128, 128
          %368 = vsyncadd %s359, %s367
          %s369 = smul.addr %s19, 128
          %s370 = scalar_lea.hbm %s5, %s369
          %s372 = sshll.u32 %s362, 4
          %s373 = int_to_ptr.vmem [resolvable:$true] %s372
          %375 = dma.vmem_to_hbm [thread:$0]  %s373, 128, %s370, %s359
        $region44: #{_stoch_vol_padded.5} parent=39 // pred_fallthru
          _
      $region40: #{_stoch_vol_padded.5} parent=5 // pred_fallthru
        _
      %p376 = scmp.le.s32.totalorder 2, %s14
      // Predicated region
      $region45: #{_stoch_vol_padded.5} parent=5 // pred_check
        %p377 = pneg %p376
      $region46: #{_stoch_vol_padded.5} parent=5 // pred_check_branch
        %379 = sbr.rel (%p377) target = $region48
      $region47: #{_stoch_vol_padded.5} parent=5 // pred_region
        %s380 = ssub.s32 %s14, 2
        // Predicated region
        $region49: #{_stoch_vol_padded.5} parent=47 // pred_check
          %p381 = pneg %p163
        $region50: #{_stoch_vol_padded.5} parent=47 // pred_check_branch
          %383 = sbr.rel (%p381) target = $region52
        $region51: #{_stoch_vol_padded.5} parent=47 // pred_region
          %s384 = sand.u32 %s148, 1
          %s385 = scalar_lea.sflag [#allocation3], %s384
          %s386 = sand.u32 %s148, 1
          %s387 = smul.addr %s386, 8
          %s388 = scalar_lea.vmem [#allocation2], %s387
          %389 = dma.done %s385, 128
        $region52: #{_stoch_vol_padded.5} parent=47 // pred_fallthru
          _
      $region48: #{_stoch_vol_padded.5} parent=5 // pred_fallthru
        _
    $region6: #{_stoch_vol_padded.5} parent=1 // loop_footer
      %s18 = sadd.s32 1, %s14
    $region7: #{_stoch_vol_padded.5} parent=1 // loop_footer_branch
      %13 = sbr.rel target = $region3
    $region8: #{_stoch_vol_padded.5} parent=1 // loop_exit
      _
    %390 = vsyncpa [#allocation3], 1
    %s391 = scalar_lea.sflag [#allocation3], 1
    %392 = vsyncpa %s391, 1

</llo_original>
